<compile_context>
chip_gen: v7x
topology: tpu7x:2x2x1
jax: 0.10.0
libtpu: 0.0.40
codegen_flags: <defaults>
</compile_context>

<pallas_src>
import functools

import jax
import jax.numpy as jnp
from jax.experimental import pallas as pl
from jax.experimental.pallas import tpu as pltpu


def _round_up(x, m):
    return (x + m - 1) // m * m


def _stack_kernel(h_ref, x_ref, wcat_ref, wv_ref, bv_ref, out_ref,
                  carry_h_ref, carry_x_ref, *, dilations, halo, compute_dtype):
    """Runs the whole CustomStack on one (batch, L-tile) block in NCL layout.

    h_ref, x_ref : (C_pad, L_tile)             activation blocks
    wcat_ref     : (n_layers, C_pad, 2*C_pad)  [W_tap0 | W_tap1] per layer
    wv_ref       : (n_layers, C_pad, C_pad)    1x1-conv weight per layer
    bv_ref       : (n_layers, C_pad, 1)        1x1-conv bias per layer
    out_ref      : (C_pad, L_tile)             output block (lane-dense store)
    carry_*_ref  : (C_pad, halo)               last halo cols of previous tile
    """
    t = pl.program_id(1)

    # First tile of each batch element: no left neighbour; the zero halo only
    # feeds output columns that the wrapper slices off.
    @pl.when(t == 0)
    def _():
        carry_h_ref[...] = jnp.zeros_like(carry_h_ref)
        carry_x_ref[...] = jnp.zeros_like(carry_x_ref)

    h_blk = h_ref[...].astype(jnp.float32)          # (C_pad, L_tile)
    x_blk = x_ref[...].astype(jnp.float32)

    # Window = [halo from previous tile | current tile] -> length L_tile + halo.
    h = jnp.concatenate([carry_h_ref[...], h_blk], axis=1)
    x = jnp.concatenate([carry_x_ref[...], x_blk], axis=1)

    l_tile = x_blk.shape[1]
    c_pad = x_blk.shape[0]
    # Save this tile's tail as the next tile's halo (read-before-write above).
    carry_h_ref[...] = h_blk[:, l_tile - halo:]
    carry_x_ref[...] = x_blk[:, l_tile - halo:]

    merged_taps = (2 * c_pad) <= 128                # static trace-time choice
    cdt = compute_dtype

    # Layer loop unrolled at trace time; h and x stay on-chip, both trimmed to
    # exactly the columns still needed (front-aligned causal recurrence):
    #   h_{i+1} = Wv_i @ h_i[:, d:] + b_i
    #   y_i     = W0_i @ x_i[:, :len-d] + W1_i @ x_i[:, d:]
    #   x_{i+1} = relu(h_{i+1} + y_i)
    for i, d in enumerate(dilations):
        nl = x.shape[1] - d

        if merged_taps:
            # Single MXU contraction with K = 2*C_pad (better fill at small C).
            x_cat = jnp.concatenate([x[:, :nl], x[:, d:]], axis=0).astype(cdt)
            y = jnp.dot(wcat_ref[i].astype(cdt), x_cat,
                        preferred_element_type=jnp.float32)
        else:
            # Two accumulating dots: avoids materializing the (2C, L) concat.
            w_full = wcat_ref[i].astype(cdt)
            y = (jnp.dot(w_full[:, :c_pad], x[:, :nl].astype(cdt),
                         preferred_element_type=jnp.float32)
                 + jnp.dot(w_full[:, c_pad:], x[:, d:].astype(cdt),
                           preferred_element_type=jnp.float32))

        # 1x1 conv only on the causal tail actually consumed downstream.
        h = jnp.dot(wv_ref[i].astype(cdt), h[:, d:].astype(cdt),
                    preferred_element_type=jnp.float32) + bv_ref[i]

        x = jnp.maximum(h + y, 0.0)                 # residual + ReLU in f32

    out_ref[...] = x.astype(out_ref.dtype)          # full (C_pad, L_tile) store


def pack_custom_stack_params(params):
    """One-time weight stacking + channel zero-padding (hoisted out of apply)."""
    channels = params[0][1].shape[0]
    c_pad = _round_up(channels, 8)
    pc = c_pad - channels

    w_dil = jnp.stack([p[0] for p in params]).astype(jnp.float32)   # (n,C,C,2)
    w_v = jnp.stack([p[1] for p in params]).astype(jnp.float32)     # (n,C,C)
    b_v = jnp.stack([p[2] for p in params]).astype(jnp.float32)     # (n,C)

    w_dil = jnp.pad(w_dil, ((0, 0), (0, pc), (0, pc), (0, 0)))
    w_v = jnp.pad(w_v, ((0, 0), (0, pc), (0, pc)))
    b_v = jnp.pad(b_v, ((0, 0), (0, pc)))[..., None]                 # (n,C_pad,1)
    w_cat = jnp.concatenate([w_dil[..., 0], w_dil[..., 1]], axis=-1)  # (n,C_pad,2C_pad)
    return w_cat, w_v, b_v


def custom_stack_pallas(h_ncl, x_ncl, packed_params, dilations, *,
                        l_tile=2048, compute_dtype=jnp.float32):
    """h_ncl, x_ncl: (B, C, L) NCL (PyTorch convention). Returns (B, C, L_final)."""
    w_cat, w_v, b_v = packed_params
    B, C, L = h_ncl.shape
    assert x_ncl.shape == (B, C, L)
    n_layers = len(dilations)
    assert w_cat.shape[0] == n_layers
    C_pad = w_cat.shape[1]
    pad_c = C_pad - C
    assert pad_c >= 0

    halo = sum(dilations)                 # total causal receptive-field extent
    L_final = L - halo
    assert L_final > 0, "sequence too short for this dilation stack"

    # Tile length: multiple of 128 (lane-dense), >= halo, no bigger than needed.
    l_tile = _round_up(max(l_tile, 128), 128)
    l_tile = min(l_tile, _round_up(L, 128))
    l_tile = max(l_tile, _round_up(halo, 128))
    num_tiles = -(-L // l_tile)
    L_padded = num_tiles * l_tile

    # Right-pad (front-aligned causal math => padded columns only feed output
    # columns that are sliced off) and zero-pad channels to C_pad.
    h_p = jnp.pad(h_ncl, ((0, 0), (0, pad_c), (0, L_padded - L)))
    x_p = jnp.pad(x_ncl, ((0, 0), (0, pad_c), (0, L_padded - L)))

    kernel = functools.partial(_stack_kernel, dilations=tuple(dilations),
                               halo=halo, compute_dtype=compute_dtype)

    # Advisory cost + explicit VMEM budget (review: mandatory sizing on v7x/v5e).
    flops = 0
    rem = L
    for d in dilations:
        rem -= d
        flops += B * (2 * (2 * C) * C + 2 * C * C) * rem
    bytes_accessed = 4 * (3 * B * C_pad * L_padded
                          + w_cat.size + w_v.size + b_v.size)
    cost = pl.CostEstimate(flops=int(flops), transcendentals=0,
                           bytes_accessed=int(bytes_accessed))

    weight_bytes = 4 * (w_cat.size + w_v.size + b_v.size)
    block_bytes = 4 * C_pad * l_tile
    est = (2 * weight_bytes + 6 * block_bytes + 8 * 4 * C_pad * (l_tile + halo))
    vmem_limit = int(min(64 * 1024 * 1024, max(32 * 1024 * 1024, 2 * est)))

    out = pl.pallas_call(
        kernel,
        out_shape=jax.ShapeDtypeStruct((B, C_pad, L_padded), x_ncl.dtype),
        grid_spec=pltpu.PrefetchScalarGridSpec(
            num_scalar_prefetch=0,
            grid=(B, num_tiles),
            in_specs=[
                pl.BlockSpec((pl.Squeezed(), C_pad, l_tile), lambda b, t: (b, 0, t)),
                pl.BlockSpec((pl.Squeezed(), C_pad, l_tile), lambda b, t: (b, 0, t)),
                pl.BlockSpec((n_layers, C_pad, 2 * C_pad), lambda b, t: (0, 0, 0)),
                pl.BlockSpec((n_layers, C_pad, C_pad), lambda b, t: (0, 0, 0)),
                pl.BlockSpec((n_layers, C_pad, 1), lambda b, t: (0, 0, 0)),
            ],
            out_specs=pl.BlockSpec((pl.Squeezed(), C_pad, l_tile),
                                   lambda b, t: (b, 0, t)),
            scratch_shapes=[pltpu.VMEM((C_pad, halo), jnp.float32),   # carry_h
                            pltpu.VMEM((C_pad, halo), jnp.float32)],  # carry_x
        ),
        compiler_params=pltpu.CompilerParams(
            dimension_semantics=("parallel", "arbitrary"),
            vmem_limit_bytes=vmem_limit),
        cost_estimate=cost,
    )(h_p, x_p, w_cat, w_v, b_v)

    # Output column o of the original module lands at padded column o + halo.
    return out[:, :C, halo:halo + L_final]


def init_custom_stack_params(key, channels, n_layers):
    """Deterministic parameter init (synthetic, not a checkpoint load)."""
    dilations = [2 ** i for i in range(n_layers)]
    params = []
    for i in range(n_layers):
        k1, k2, k3 = jax.random.split(jax.random.fold_in(key, i), 3)
        # DilatedCausalConv: Conv1d(C, C, 2, dilation=d, bias=False) -> (C, C, 2)
        w_dil = 0.1 * jax.random.normal(k1, (channels, channels, 2), jnp.float32)
        # v: Conv1d(C, C, 1) -> weight (C, C), bias (C,)
        w_v = 0.1 * jax.random.normal(k2, (channels, channels), jnp.float32)
        b_v = 0.1 * jax.random.normal(k3, (channels,), jnp.float32)
        params.append((w_dil, w_v, b_v))
    return params, dilations


def custom_stack_reference(h, x, params, dilations):
    """Pure-JAX NCL reference matching the PyTorch forward."""
    for (w_dil, w_v, b_v), d in zip(params, dilations):
        l_out = x.shape[2] - d
        y = (jnp.einsum('oi,bil->bol', w_dil[:, :, 0], x[:, :, :l_out])
             + jnp.einsum('oi,bil->bol', w_dil[:, :, 1], x[:, :, d:]))
        h = jnp.einsum('oi,bil->bol', w_v, h) + b_v[None, :, None]
        x = jnp.maximum(h[:, :, -l_out:] + y, 0.0)
    return x


if __name__ == "__main__":
    key = jax.random.PRNGKey(0)

    def run_case(case_id, B, C, L, n_layers, l_tile, compute_dtype, atol, rtol):
        k = jax.random.fold_in(key, case_id)
        k_h, k_x, k_p = jax.random.split(k, 3)
        h0 = jax.random.normal(k_h, (B, C, L), jnp.float32)   # PyTorch NCL
        x0 = jax.random.normal(k_x, (B, C, L), jnp.float32)
        params, dilations = init_custom_stack_params(k_p, C, n_layers)
        packed = pack_custom_stack_params(params)

        out = custom_stack_pallas(h0, x0, packed, dilations,
                                  l_tile=l_tile, compute_dtype=compute_dtype)
        out = jax.block_until_ready(out)

        ref = custom_stack_reference(h0, x0, params, dilations)
        assert out.shape == (B, C, L - sum(dilations)), out.shape
        err = float(jnp.max(jnp.abs(out - ref)))
        assert jnp.allclose(out, ref, atol=atol, rtol=rtol), (case_id, err)

    # 1) tiny single-tile case with channel padding (C=4 -> C_pad=8), exact f32.
    run_case(0, B=2, C=4, L=16, n_layers=3, l_tile=2048,
             compute_dtype=jnp.float32, atol=1e-5, rtol=1e-5)
    # 2) multi-tile case exercising the halo carry across L tiles, exact f32.
    run_case(1, B=2, C=8, L=300, n_layers=3, l_tile=128,
             compute_dtype=jnp.float32, atol=1e-5, rtol=1e-5)
    # 3) bf16 MXU-operand fast path (v6e/v7x), looser tolerance.
    run_case(2, B=2, C=8, L=300, n_layers=3, l_tile=128,
             compute_dtype=jnp.bfloat16, atol=5e-2, rtol=5e-2)

    print("KERNEL_OK")
</pallas_src>

<mosaic_0001>
module attributes {stable_mosaic.version = 11 : i64} {
  func.func @_stack_kernel(%arg0: i32, %arg1: i32, %arg2: memref<1x8x128xf32, #tpu.memory_space<vmem>>, %arg3: memref<1x8x128xf32, #tpu.memory_space<vmem>>, %arg4: memref<3x8x16xf32, #tpu.memory_space<vmem>>, %arg5: memref<3x8x8xf32, #tpu.memory_space<vmem>>, %arg6: memref<3x8x1xf32, #tpu.memory_space<vmem>>, %arg7: memref<1x8x128xf32, #tpu.memory_space<vmem>>, %arg8: memref<8x7xf32, #tpu.memory_space<vmem>>, %arg9: memref<8x7xf32, #tpu.memory_space<vmem>>) attributes {dimension_semantics = [#tpu.dimension_semantics<parallel>, #tpu.dimension_semantics<arbitrary>], iteration_bounds = array<i64: 2, 1>, scalar_prefetch = 0 : i64, scratch_operands = 2 : i64, tpu.core_type = #tpu.core_type<tc>, window_params = [{transform_indices = @transform_0, window_bounds = array<i64: 1, 8, 128>}, {transform_indices = @transform_1, window_bounds = array<i64: 1, 8, 128>}, {pipeline_mode = #tpu.pipeline_mode<synchronous>, transform_indices = @transform_2, window_bounds = array<i64: 3, 8, 16>}, {pipeline_mode = #tpu.pipeline_mode<synchronous>, transform_indices = @transform_3, window_bounds = array<i64: 3, 8, 8>}, {pipeline_mode = #tpu.pipeline_mode<synchronous>, transform_indices = @transform_4, window_bounds = array<i64: 3, 8, 1>}, {transform_indices = @transform_5, window_bounds = array<i64: 1, 8, 128>}]} {
    %c0_i32 = arith.constant 0 : i32
    %0 = arith.cmpi eq, %arg1, %c0_i32 : i32
    %1 = arith.extui %0 : i1 to i32
    %c0_i32_0 = arith.constant 0 : i32
    %2 = arith.cmpi ne, %1, %c0_i32_0 : i32
    scf.if %2 {
      %cst_50 = arith.constant 0.000000e+00 : f32
      %69 = vector.broadcast %cst_50 : f32 to vector<8x7xf32>
      %c0_51 = arith.constant 0 : index
      %c0_52 = arith.constant 0 : index
      %70 = vector.load %arg8[%c0_51, %c0_52] : memref<8x7xf32, #tpu.memory_space<vmem>>, vector<8x7xf32>
      tpu.vector_store %arg8[%c0_51, %c0_52], %69 {strides = array<i32>} : memref<8x7xf32, #tpu.memory_space<vmem>>, vector<8x7xf32>,
      %cst_53 = arith.constant 0.000000e+00 : f32
      %71 = vector.broadcast %cst_53 : f32 to vector<8x7xf32>
      %c0_54 = arith.constant 0 : index
      %c0_55 = arith.constant 0 : index
      %72 = vector.load %arg9[%c0_54, %c0_55] : memref<8x7xf32, #tpu.memory_space<vmem>>, vector<8x7xf32>
      tpu.vector_store %arg9[%c0_54, %c0_55], %71 {strides = array<i32>} : memref<8x7xf32, #tpu.memory_space<vmem>>, vector<8x7xf32>,
    } else {
    }
    %c0 = arith.constant 0 : index
    %c0_1 = arith.constant 0 : index
    %c0_2 = arith.constant 0 : index
    %3 = vector.load %arg2[%c0, %c0_1, %c0_2] : memref<1x8x128xf32, #tpu.memory_space<vmem>>, vector<1x8x128xf32>
    %4 = vector.shape_cast %3 : vector<1x8x128xf32> to vector<8x128xf32>
    %c0_3 = arith.constant 0 : index
    %c0_4 = arith.constant 0 : index
    %c0_5 = arith.constant 0 : index
    %5 = vector.load %arg3[%c0_3, %c0_4, %c0_5] : memref<1x8x128xf32, #tpu.memory_space<vmem>>, vector<1x8x128xf32>
    %6 = vector.shape_cast %5 : vector<1x8x128xf32> to vector<8x128xf32>
    %c0_6 = arith.constant 0 : index
    %c0_7 = arith.constant 0 : index
    %7 = vector.load %arg8[%c0_6, %c0_7] : memref<8x7xf32, #tpu.memory_space<vmem>>, vector<8x7xf32>
    %8 = tpu.concatenate %7, %4 in 1 : vector<8x7xf32>, vector<8x128xf32> -> vector<8x135xf32>
    %c0_8 = arith.constant 0 : index
    %c0_9 = arith.constant 0 : index
    %9 = vector.load %arg9[%c0_8, %c0_9] : memref<8x7xf32, #tpu.memory_space<vmem>>, vector<8x7xf32>
    %10 = tpu.concatenate %9, %6 in 1 : vector<8x7xf32>, vector<8x128xf32> -> vector<8x135xf32>
    %11 = vector.extract_strided_slice %4 {offsets = [0, 121], sizes = [8, 7], strides = [1, 1]} : vector<8x128xf32> to vector<8x7xf32>
    %c0_10 = arith.constant 0 : index
    %c0_11 = arith.constant 0 : index
    %12 = vector.load %arg8[%c0_10, %c0_11] : memref<8x7xf32, #tpu.memory_space<vmem>>, vector<8x7xf32>
    tpu.vector_store %arg8[%c0_10, %c0_11], %11 {strides = array<i32>} : memref<8x7xf32, #tpu.memory_space<vmem>>, vector<8x7xf32>,
    %13 = vector.extract_strided_slice %6 {offsets = [0, 121], sizes = [8, 7], strides = [1, 1]} : vector<8x128xf32> to vector<8x7xf32>
    %c0_12 = arith.constant 0 : index
    %c0_13 = arith.constant 0 : index
    %14 = vector.load %arg9[%c0_12, %c0_13] : memref<8x7xf32, #tpu.memory_space<vmem>>, vector<8x7xf32>
    tpu.vector_store %arg9[%c0_12, %c0_13], %13 {strides = array<i32>} : memref<8x7xf32, #tpu.memory_space<vmem>>, vector<8x7xf32>,
    %15 = vector.extract_strided_slice %10 {offsets = [0, 0], sizes = [8, 134], strides = [1, 1]} : vector<8x135xf32> to vector<8x134xf32>
    %16 = vector.extract_strided_slice %10 {offsets = [0, 1], sizes = [8, 134], strides = [1, 1]} : vector<8x135xf32> to vector<8x134xf32>
    %17 = tpu.concatenate %15, %16 in 0 : vector<8x134xf32>, vector<8x134xf32> -> vector<16x134xf32>
    %c0_14 = arith.constant 0 : index
    %c0_15 = arith.constant 0 : index
    %c0_16 = arith.constant 0 : index
    %18 = vector.load %arg4[%c0_14, %c0_15, %c0_16] : memref<3x8x16xf32, #tpu.memory_space<vmem>>, vector<1x8x16xf32>
    %19 = vector.shape_cast %18 : vector<1x8x16xf32> to vector<8x16xf32>
    %cst = arith.constant dense<0.000000e+00> : vector<8x134xf32>
    %20 = tpu.matmul %19, %17, %cst {dimension_numbers = #tpu.dot_dimension_numbers<[1], [0], [0], [1], [0, 0, 1, 1], [], []>} : vector<8x16xf32>, vector<16x134xf32>, vector<8x134xf32> -> vector<8x134xf32>
    %c0_17 = arith.constant 0 : index
    %c0_18 = arith.constant 0 : index
    %c0_19 = arith.constant 0 : index
    %21 = vector.load %arg5[%c0_17, %c0_18, %c0_19] : memref<3x8x8xf32, #tpu.memory_space<vmem>>, vector<1x8x8xf32>
    %22 = vector.shape_cast %21 : vector<1x8x8xf32> to vector<8x8xf32>
    %23 = vector.extract_strided_slice %8 {offsets = [0, 1], sizes = [8, 134], strides = [1, 1]} : vector<8x135xf32> to vector<8x134xf32>
    %cst_20 = arith.constant dense<0.000000e+00> : vector<8x134xf32>
    %24 = tpu.matmul %22, %23, %cst_20 {dimension_numbers = #tpu.dot_dimension_numbers<[1], [0], [0], [1], [0, 0, 1, 1], [], []>} : vector<8x8xf32>, vector<8x134xf32>, vector<8x134xf32> -> vector<8x134xf32>
    %c0_21 = arith.constant 0 : index
    %c0_22 = arith.constant 0 : index
    %c0_23 = arith.constant 0 : index
    %25 = vector.load %arg6[%c0_21, %c0_22, %c0_23] : memref<3x8x1xf32, #tpu.memory_space<vmem>>, vector<1x8x1xf32>
    %26 = vector.shape_cast %25 : vector<1x8x1xf32> to vector<8x1xf32>
    %27 = vector.broadcast %26 : vector<8x1xf32> to vector<8x134xf32>
    %28 = arith.addf %24, %27 : vector<8x134xf32>
    %29 = arith.addf %28, %20 : vector<8x134xf32>
    %cst_24 = arith.constant 0.000000e+00 : f32
    %30 = vector.broadcast %cst_24 : f32 to vector<8x134xf32>
    %31 = arith.maximumf %29, %30 : vector<8x134xf32>
    %32 = vector.extract_strided_slice %31 {offsets = [0, 0], sizes = [8, 132], strides = [1, 1]} : vector<8x134xf32> to vector<8x132xf32>
    %33 = vector.extract_strided_slice %31 {offsets = [0, 2], sizes = [8, 132], strides = [1, 1]} : vector<8x134xf32> to vector<8x132xf32>
    %34 = tpu.concatenate %32, %33 in 0 : vector<8x132xf32>, vector<8x132xf32> -> vector<16x132xf32>
    %c1 = arith.constant 1 : index
    %c0_25 = arith.constant 0 : index
    %c0_26 = arith.constant 0 : index
    %35 = vector.load %arg4[%c1, %c0_25, %c0_26] : memref<3x8x16xf32, #tpu.memory_space<vmem>>, vector<1x8x16xf32>
    %36 = vector.shape_cast %35 : vector<1x8x16xf32> to vector<8x16xf32>
    %cst_27 = arith.constant dense<0.000000e+00> : vector<8x132xf32>
    %37 = tpu.matmul %36, %34, %cst_27 {dimension_numbers = #tpu.dot_dimension_numbers<[1], [0], [0], [1], [0, 0, 1, 1], [], []>} : vector<8x16xf32>, vector<16x132xf32>, vector<8x132xf32> -> vector<8x132xf32>
    %c1_28 = arith.constant 1 : index
    %c0_29 = arith.constant 0 : index
    %c0_30 = arith.constant 0 : index
    %38 = vector.load %arg5[%c1_28, %c0_29, %c0_30] : memref<3x8x8xf32, #tpu.memory_space<vmem>>, vector<1x8x8xf32>
    %39 = vector.shape_cast %38 : vector<1x8x8xf32> to vector<8x8xf32>
    %40 = vector.extract_strided_slice %28 {offsets = [0, 2], sizes = [8, 132], strides = [1, 1]} : vector<8x134xf32> to vector<8x132xf32>
    %cst_31 = arith.constant dense<0.000000e+00> : vector<8x132xf32>
    %41 = tpu.matmul %39, %40, %cst_31 {dimension_numbers = #tpu.dot_dimension_numbers<[1], [0], [0], [1], [0, 0, 1, 1], [], []>} : vector<8x8xf32>, vector<8x132xf32>, vector<8x132xf32> -> vector<8x132xf32>
    %c1_32 = arith.constant 1 : index
    %c0_33 = arith.constant 0 : index
    %c0_34 = arith.constant 0 : index
    %42 = vector.load %arg6[%c1_32, %c0_33, %c0_34] : memref<3x8x1xf32, #tpu.memory_space<vmem>>, vector<1x8x1xf32>
    %43 = vector.shape_cast %42 : vector<1x8x1xf32> to vector<8x1xf32>
    %44 = vector.broadcast %43 : vector<8x1xf32> to vector<8x132xf32>
    %45 = arith.addf %41, %44 : vector<8x132xf32>
    %46 = arith.addf %45, %37 : vector<8x132xf32>
    %cst_35 = arith.constant 0.000000e+00 : f32
    %47 = vector.broadcast %cst_35 : f32 to vector<8x132xf32>
    %48 = arith.maximumf %46, %47 : vector<8x132xf32>
    %49 = vector.extract_strided_slice %48 {offsets = [0, 0], sizes = [8, 128], strides = [1, 1]} : vector<8x132xf32> to vector<8x128xf32>
    %50 = vector.extract_strided_slice %48 {offsets = [0, 4], sizes = [8, 128], strides = [1, 1]} : vector<8x132xf32> to vector<8x128xf32>
    %51 = tpu.concatenate %49, %50 in 0 : vector<8x128xf32>, vector<8x128xf32> -> vector<16x128xf32>
    %c2 = arith.constant 2 : index
    %c0_36 = arith.constant 0 : index
    %c0_37 = arith.constant 0 : index
    %52 = vector.load %arg4[%c2, %c0_36, %c0_37] : memref<3x8x16xf32, #tpu.memory_space<vmem>>, vector<1x8x16xf32>
    %53 = vector.shape_cast %52 : vector<1x8x16xf32> to vector<8x16xf32>
    %cst_38 = arith.constant dense<0.000000e+00> : vector<8x128xf32>
    %54 = tpu.matmul %53, %51, %cst_38 {dimension_numbers = #tpu.dot_dimension_numbers<[1], [0], [0], [1], [0, 0, 1, 1], [], []>} : vector<8x16xf32>, vector<16x128xf32>, vector<8x128xf32> -> vector<8x128xf32>
    %c2_39 = arith.constant 2 : index
    %c0_40 = arith.constant 0 : index
    %c0_41 = arith.constant 0 : index
    %55 = vector.load %arg5[%c2_39, %c0_40, %c0_41] : memref<3x8x8xf32, #tpu.memory_space<vmem>>, vector<1x8x8xf32>
    %56 = vector.shape_cast %55 : vector<1x8x8xf32> to vector<8x8xf32>
    %57 = vector.extract_strided_slice %45 {offsets = [0, 4], sizes = [8, 128], strides = [1, 1]} : vector<8x132xf32> to vector<8x128xf32>
    %cst_42 = arith.constant dense<0.000000e+00> : vector<8x128xf32>
    %58 = tpu.matmul %56, %57, %cst_42 {dimension_numbers = #tpu.dot_dimension_numbers<[1], [0], [0], [1], [0, 0, 1, 1], [], []>} : vector<8x8xf32>, vector<8x128xf32>, vector<8x128xf32> -> vector<8x128xf32>
    %c2_43 = arith.constant 2 : index
    %c0_44 = arith.constant 0 : index
    %c0_45 = arith.constant 0 : index
    %59 = vector.load %arg6[%c2_43, %c0_44, %c0_45] : memref<3x8x1xf32, #tpu.memory_space<vmem>>, vector<1x8x1xf32>
    %60 = vector.shape_cast %59 : vector<1x8x1xf32> to vector<8x1xf32>
    %61 = vector.broadcast %60 : vector<8x1xf32> to vector<8x128xf32>
    %62 = arith.addf %58, %61 : vector<8x128xf32>
    %63 = arith.addf %62, %54 : vector<8x128xf32>
    %cst_46 = arith.constant 0.000000e+00 : f32
    %64 = vector.broadcast %cst_46 : f32 to vector<8x128xf32>
    %65 = arith.maximumf %63, %64 : vector<8x128xf32>
    %c0_47 = arith.constant 0 : index
    %c0_48 = arith.constant 0 : index
    %c0_49 = arith.constant 0 : index
    %66 = vector.load %arg7[%c0_47, %c0_48, %c0_49] : memref<1x8x128xf32, #tpu.memory_space<vmem>>, vector<1x8x128xf32>
    %67 = vector.shape_cast %66 : vector<1x8x128xf32> to vector<8x128xf32>
    %68 = vector.shape_cast %65 : vector<8x128xf32> to vector<1x8x128xf32>
    tpu.vector_store %arg7[%c0_47, %c0_48, %c0_49], %68 {strides = array<i32>} : memref<1x8x128xf32, #tpu.memory_space<vmem>>, vector<1x8x128xf32>,
    return
  }
  func.func @transform_0(%arg0: i32, %arg1: i32) -> (i32, i32, i32) {
    %c0_i32 = arith.constant 0 : i32
    %c0_i32_0 = arith.constant 0 : i32
    return %arg0, %c0_i32, %arg1 : i32, i32, i32
  }
  func.func @transform_1(%arg0: i32, %arg1: i32) -> (i32, i32, i32) {
    %c0_i32 = arith.constant 0 : i32
    %c0_i32_0 = arith.constant 0 : i32
    return %arg0, %c0_i32, %arg1 : i32, i32, i32
  }
  func.func @transform_2(%arg0: i32, %arg1: i32) -> (i32, i32, i32) {
    %c0_i32 = arith.constant 0 : i32
    %c0_i32_0 = arith.constant 0 : i32
    %c0_i32_1 = arith.constant 0 : i32
    %c0_i32_2 = arith.constant 0 : i32
    return %c0_i32, %c0_i32_0, %c0_i32_1 : i32, i32, i32
  }
  func.func @transform_3(%arg0: i32, %arg1: i32) -> (i32, i32, i32) {
    %c0_i32 = arith.constant 0 : i32
    %c0_i32_0 = arith.constant 0 : i32
    %c0_i32_1 = arith.constant 0 : i32
    %c0_i32_2 = arith.constant 0 : i32
    return %c0_i32, %c0_i32_0, %c0_i32_1 : i32, i32, i32
  }
  func.func @transform_4(%arg0: i32, %arg1: i32) -> (i32, i32, i32) {
    %c0_i32 = arith.constant 0 : i32
    %c0_i32_0 = arith.constant 0 : i32
    %c0_i32_1 = arith.constant 0 : i32
    %c0_i32_2 = arith.constant 0 : i32
    return %c0_i32, %c0_i32_0, %c0_i32_1 : i32, i32, i32
  }
  func.func @transform_5(%arg0: i32, %arg1: i32) -> (i32, i32, i32) {
    %c0_i32 = arith.constant 0 : i32
    %c0_i32_0 = arith.constant 0 : i32
    return %arg0, %c0_i32, %arg1 : i32, i32, i32
  }
}

</mosaic_0001>

<llo_original>
// kernel: tpu_custom_call.1
$region0: #{tpu_custom_call.1}
  #allocation0 [shape = 'u32[]', space=smem, size = 0x4, offset = 0x4, fixed_abs, tag = 'smem constant byte address 0x4 - core index']
  #allocation1 [shape = 'u32[144,128]{1,0:T(1,128)}', space=vmem, size = 0x12000, scoped, tag = 'internal scratch']
  #allocation2 [shape = 'f32[8,7]{1,0:T(8,128)}', space=vmem, size = 0x1000, scoped, tag = 'scratch operand']
  #allocation3 [shape = 'f32[8,7]{1,0:T(8,128)}', space=vmem, size = 0x1000, scoped, tag = 'scratch operand']
  %s0 = inlined_call_operand.hbm [shape: f32[2,8,128], index: 0, kind: input, shape index: {}]
  %s1 = inlined_call_operand.hbm [shape: f32[2,8,128], index: 1, kind: input, shape index: {}]
  %s2 = inlined_call_operand.vmem [shape: f32[3,8,16], index: 2, kind: input, shape index: {}]
  %s3 = inlined_call_operand.hbm [shape: f32[3,8,8], index: 3, kind: input, shape index: {}]
  %s4 = inlined_call_operand.vmem [shape: f32[3,8,1], index: 4, kind: input, shape index: {}]
  %s5 = inlined_call_operand.hbm [shape: f32[2,8,128], index: 5, kind: output, shape index: {}]
  %s6 = sld [smem:[#allocation0]]
  $region69: #{tpu_custom_call.1} parent=0
    _
  %s8 = ssub.s32 1, %s6
  %s9 = scalar_select 0, %s8, %s6
  $region1: #{tpu_custom_call.1} parent=0
    #allocation4 [shape = 'u8[8192]{0}', space=vmem, size = 0x2000, scoped, tag = 'input window, operand 0']
    #allocation5 [shape = 's32[2]{0}', space=sflag, size = 0x8, scoped, tag = 'scoped memory for tpu_custom_call.1']
    #allocation6 [shape = 's32[2]{0}', space=sflag, size = 0x8, scoped, tag = 'scoped memory for tpu_custom_call.1']
    #allocation7 [shape = 'u8[8192]{0}', space=vmem, size = 0x2000, scoped, tag = 'input window, operand 1']
    #allocation8 [shape = 's32[2]{0}', space=sflag, size = 0x8, scoped, tag = 'scoped memory for tpu_custom_call.1']
    #allocation9 [shape = 'u8[12288]{0}', space=vmem, size = 0x3000, scoped, tag = 'input window, operand 3, single buffered']
    #allocation10 [shape = 'u8[8192]{0}', space=vmem, size = 0x2000, scoped, tag = 'output window, operand 0']
    %10 = vsyncpa [#allocation5], 0
    %s11 = scalar_lea.sflag [#allocation5], 1
    %12 = vsyncpa %s11, 0
    %13 = vsyncpa [#allocation8], 0
    %s14 = scalar_lea.sflag [#allocation8], 1
    %15 = vsyncpa %s14, 0
    %16 = vsyncpa [#allocation6], 0
    %s17 = scalar_lea.sflag [#allocation6], 1
    %18 = vsyncpa %s17, 0
    loop: start=0, step=1, limit=4
    $region2: #{tpu_custom_call.1} parent=1 // loop_pre_header
      _
    $region3: #{tpu_custom_call.1} parent=1 // loop_header
      %s20 = sphi 0, %s24
      %p21 = scmp.ge.s32.totalorder %s20, 4
      %s27 = sphi 0, %s39
      %s28 = sphi 0, %s35
      %s29 = sphi 0, %s27
      %s30 = sphi 0, %s28
      %s31 = sphi 0, %s29
      %s32 = sphi 0, %s30
      %s44 = sphi 0, %s46
      %s47 = sphi 0, %s44
      %s48 = sphi 0, %s47
      %s64 = sphi 0, %s48
      %s72 = sphi 0, %s74
      %s75 = sphi 0, %s72
      %s76 = sphi 0, %s75
      %s92 = sphi 0, %s76
      %s96 = sphi 0, %s96
      %s98 = sphi 0, %s96
      %s99 = sphi 0, %s98
      %s113 = sphi 0, %s99
      %s117 = sphi 0, %s117
      %s119 = sphi 0, %s117
      %s120 = sphi 0, %s119
      %s134 = sphi 0, %s120
      %s138 = sphi 0, %s138
      %s140 = sphi 0, %s138
      %s141 = sphi 0, %s140
      %s155 = sphi 0, %s141
      %s163 = sphi 0, %s165
      %s166 = sphi 0, %s163
      %s167 = sphi 0, %s166
      %s183 = sphi 0, %s167
    $region4: #{tpu_custom_call.1} parent=1 // loop_header_branch
      %23 = sbr.rel (%p21) target = $region8
    $region5: #{tpu_custom_call.1} parent=1 // loop_body
      %s25 = ssub.s32 %s20, 1
      %s26 = ssub.s32 %s20, 2
      %s33 = sadd.s32 1, %s28
      %p34 = scmp.ge.s32.totalorder %s33, 1
      %s35 = scalar_select %p34, 0, %s33
      %s36 = sadd.s32 1, %s27
      %s37 = scalar_select %p34, %s36, %s27
      %p38 = scmp.ge.s32.totalorder %s37, 2
      %s39 = scalar_select %p38, 0, %s37
      %s40 = ssub.s32 %s27, %s39
      %s41 = ssub.s32 %s28, %s35
      %s42 = sor.u32 %s40, %s41
      %p43 = scmp.eq.s32.totalorder %s42, 0
      %s45 = sadd.s32 %s44, 1
      %s46 = scalar_select %p43, %s44, %s45
      %p49 = pneg %p43
      %p50 = scmp.eq.s32.totalorder %s20, 1
      %p51 = por %p49, %p50
      %p52 = scmp.ne.s32.totalorder %s44, %s47
      %p53 = scmp.eq.s32.totalorder %s20, 0
      %p54 = por %p52, %p53
      %p55 = scmp.ne.s32.totalorder %s44, %s47
      %p56 = scmp.eq.s32.totalorder %s25, 1
      %p57 = por %p55, %p56
      %p58 = scmp.ne.s32.totalorder %s47, %s48
      %p59 = scmp.eq.s32.totalorder %s25, 0
      %p60 = por %p58, %p59
      %p61 = scmp.ne.s32.totalorder %s47, %s48
      %p62 = scmp.eq.s32.totalorder %s26, 1
      %p63 = por %p61, %p62
      %p65 = scmp.ne.s32.totalorder %s48, %s64
      %p66 = scmp.eq.s32.totalorder %s26, 0
      %p67 = por %p65, %p66
      %s68 = ssub.s32 %s27, %s39
      %s69 = ssub.s32 %s28, %s35
      %s70 = sor.u32 %s68, %s69
      %p71 = scmp.eq.s32.totalorder %s70, 0
      %s73 = sadd.s32 %s72, 1
      %s74 = scalar_select %p71, %s72, %s73
      %p77 = pneg %p71
      %p78 = scmp.eq.s32.totalorder %s20, 1
      %p79 = por %p77, %p78
      %p80 = scmp.ne.s32.totalorder %s72, %s75
      %p81 = scmp.eq.s32.totalorder %s20, 0
      %p82 = por %p80, %p81
      %p83 = scmp.ne.s32.totalorder %s72, %s75
      %p84 = scmp.eq.s32.totalorder %s25, 1
      %p85 = por %p83, %p84
      %p86 = scmp.ne.s32.totalorder %s75, %s76
      %p87 = scmp.eq.s32.totalorder %s25, 0
      %p88 = por %p86, %p87
      %p89 = scmp.ne.s32.totalorder %s75, %s76
      %p90 = scmp.eq.s32.totalorder %s26, 1
      %p91 = por %p89, %p90
      %p93 = scmp.ne.s32.totalorder %s76, %s92
      %p94 = scmp.eq.s32.totalorder %s26, 0
      %p95 = por %p93, %p94
      %s97 = sadd.s32 %s96, 1
      %p100 = scmp.eq.s32.totalorder %s20, 1
      %p101 = scmp.ne.s32.totalorder %s96, %s98
      %p102 = scmp.eq.s32.totalorder %s20, 0
      %p103 = por %p101, %p102
      %p104 = scmp.ne.s32.totalorder %s96, %s98
      %p105 = scmp.eq.s32.totalorder %s25, 1
      %p106 = por %p104, %p105
      %p107 = scmp.ne.s32.totalorder %s98, %s99
      %p108 = scmp.eq.s32.totalorder %s25, 0
      %p109 = por %p107, %p108
      %p110 = scmp.ne.s32.totalorder %s98, %s99
      %p111 = scmp.eq.s32.totalorder %s26, 1
      %p112 = por %p110, %p111
      %p114 = scmp.ne.s32.totalorder %s99, %s113
      %p115 = scmp.eq.s32.totalorder %s26, 0
      %p116 = por %p114, %p115
      %s118 = sadd.s32 %s117, 1
      %p121 = scmp.eq.s32.totalorder %s20, 1
      %p122 = scmp.ne.s32.totalorder %s117, %s119
      %p123 = scmp.eq.s32.totalorder %s20, 0
      %p124 = por %p122, %p123
      %p125 = scmp.ne.s32.totalorder %s117, %s119
      %p126 = scmp.eq.s32.totalorder %s25, 1
      %p127 = por %p125, %p126
      %p128 = scmp.ne.s32.totalorder %s119, %s120
      %p129 = scmp.eq.s32.totalorder %s25, 0
      %p130 = por %p128, %p129
      %p131 = scmp.ne.s32.totalorder %s119, %s120
      %p132 = scmp.eq.s32.totalorder %s26, 1
      %p133 = por %p131, %p132
      %p135 = scmp.ne.s32.totalorder %s120, %s134
      %p136 = scmp.eq.s32.totalorder %s26, 0
      %p137 = por %p135, %p136
      %s139 = sadd.s32 %s138, 1
      %p142 = scmp.eq.s32.totalorder %s20, 1
      %p143 = scmp.ne.s32.totalorder %s138, %s140
      %p144 = scmp.eq.s32.totalorder %s20, 0
      %p145 = por %p143, %p144
      %p146 = scmp.ne.s32.totalorder %s138, %s140
      %p147 = scmp.eq.s32.totalorder %s25, 1
      %p148 = por %p146, %p147
      %p149 = scmp.ne.s32.totalorder %s140, %s141
      %p150 = scmp.eq.s32.totalorder %s25, 0
      %p151 = por %p149, %p150
      %p152 = scmp.ne.s32.totalorder %s140, %s141
      %p153 = scmp.eq.s32.totalorder %s26, 1
      %p154 = por %p152, %p153
      %p156 = scmp.ne.s32.totalorder %s141, %s155
      %p157 = scmp.eq.s32.totalorder %s26, 0
      %p158 = por %p156, %p157
      %s159 = ssub.s32 %s27, %s39
      %s160 = ssub.s32 %s28, %s35
      %s161 = sor.u32 %s159, %s160
      %p162 = scmp.eq.s32.totalorder %s161, 0
      %s164 = sadd.s32 %s163, 1
      %s165 = scalar_select %p162, %s163, %s164
      %p168 = pneg %p162
      %p169 = scmp.eq.s32.totalorder %s20, 1
      %p170 = por %p168, %p169
      %p171 = scmp.ne.s32.totalorder %s163, %s166
      %p172 = scmp.eq.s32.totalorder %s20, 0
      %p173 = por %p171, %p172
      %p174 = scmp.ne.s32.totalorder %s163, %s166
      %p175 = scmp.eq.s32.totalorder %s25, 1
      %p176 = por %p174, %p175
      %p177 = scmp.ne.s32.totalorder %s166, %s167
      %p178 = scmp.eq.s32.totalorder %s25, 0
      %p179 = por %p177, %p178
      %p180 = scmp.ne.s32.totalorder %s166, %s167
      %p181 = scmp.eq.s32.totalorder %s26, 1
      %p182 = por %p180, %p181
      %p184 = scmp.ne.s32.totalorder %s167, %s183
      %p185 = scmp.eq.s32.totalorder %s26, 0
      %p186 = por %p184, %p185
      %p187 = scmp.le.s32.totalorder 1, %s20
      %p188 = scmp.lt.s32.totalorder %s20, 3
      %p189 = pnand %p187, %p188
      %p190 = pneg %p189
      // Predicated region
      $region9: #{tpu_custom_call.1} parent=5 // pred_check
        _
      $region10: #{tpu_custom_call.1} parent=5 // pred_check_branch
        %192 = sbr.rel (%p189) target = $region12
      $region11: #{tpu_custom_call.1} parent=5 // pred_region
        %s193 = ssub.s32 %s20, 1
        // Predicated region
        $region13: #{tpu_custom_call.1} parent=11 // pred_check
          %p194 = pneg %p109
        $region14: #{tpu_custom_call.1} parent=11 // pred_check_branch
          %196 = sbr.rel (%p194) target = $region16
        $region15: #{tpu_custom_call.1} parent=11 // pred_region
          _
        $region16: #{tpu_custom_call.1} parent=11 // pred_fallthru
          _
        // Predicated region
        $region17: #{tpu_custom_call.1} parent=11 // pred_check
          %p197 = pneg %p130
        $region18: #{tpu_custom_call.1} parent=11 // pred_check_branch
          %199 = sbr.rel (%p197) target = $region20
        $region19: #{tpu_custom_call.1} parent=11 // pred_region
          %s201 = ssub.s32 384, 384
          %202 = vsyncadd [#allocation8], %s201
          %s203 = sshll.u32 [#allocation9], 4
          %s204 = int_to_ptr.vmem [resolvable:$true] %s203
          %209 = dma.hbm_to_vmem [thread:$0]  %s3, 384, %s204, [#allocation8], 128, 128, 8
        $region20: #{tpu_custom_call.1} parent=11 // pred_fallthru
          _
        // Predicated region
        $region21: #{tpu_custom_call.1} parent=11 // pred_check
          %p210 = pneg %p151
        $region22: #{tpu_custom_call.1} parent=11 // pred_check_branch
          %212 = sbr.rel (%p210) target = $region24
        $region23: #{tpu_custom_call.1} parent=11 // pred_region
          _
        $region24: #{tpu_custom_call.1} parent=11 // pred_fallthru
          _
      $region12: #{tpu_custom_call.1} parent=5 // pred_fallthru
        _
      %p213 = scmp.lt.s32.totalorder %s20, 2
      // Predicated region
      $region25: #{tpu_custom_call.1} parent=5 // pred_check
        %p214 = pneg %p213
      $region26: #{tpu_custom_call.1} parent=5 // pred_check_branch
        %216 = sbr.rel (%p214) target = $region28
      $region27: #{tpu_custom_call.1} parent=5 // pred_region
        // Predicated region
        $region29: #{tpu_custom_call.1} parent=27 // pred_check
          %p217 = pneg %p54
        $region30: #{tpu_custom_call.1} parent=27 // pred_check_branch
          %219 = sbr.rel (%p217) target = $region32
        $region31: #{tpu_custom_call.1} parent=27 // pred_region
          %s220 = sand.u32 %s44, 1
          %s221 = scalar_lea.sflag [#allocation5], %s220
          %s222 = sand.u32 %s44, 1
          %s223 = smul.addr %s222, 8
          %s224 = scalar_lea.vmem [#allocation4], %s223
          %s226 = ssub.s32 128, 128
          %227 = vsyncadd %s221, %s226
          %s228 = sadd.s32 %s28, %s27
          %s229 = smul.addr %s228, 128
          %s230 = scalar_lea.hbm %s0, %s229
          %s232 = sshll.u32 %s224, 4
          %s233 = int_to_ptr.vmem [resolvable:$true] %s232
          %235 = dma.hbm_to_vmem [thread:$0]  %s230, 128, %s233, %s221
        $region32: #{tpu_custom_call.1} parent=27 // pred_fallthru
          _
        // Predicated region
        $region33: #{tpu_custom_call.1} parent=27 // pred_check
          %p236 = pneg %p82
        $region34: #{tpu_custom_call.1} parent=27 // pred_check_branch
          %238 = sbr.rel (%p236) target = $region36
        $region35: #{tpu_custom_call.1} parent=27 // pred_region
          %s239 = sand.u32 %s20, 1
          %s240 = scalar_lea.sflag [#allocation8], %s239
          %s241 = sand.u32 %s72, 1
          %s242 = smul.addr %s241, 8
          %s243 = scalar_lea.vmem [#allocation7], %s242
          %s245 = ssub.s32 128, 128
          %246 = vsyncadd %s240, %s245
          %s247 = sadd.s32 %s28, %s27
          %s248 = smul.addr %s247, 128
          %s249 = scalar_lea.hbm %s1, %s248
          %s251 = sshll.u32 %s243, 4
          %s252 = int_to_ptr.vmem [resolvable:$true] %s251
          %254 = dma.hbm_to_vmem [thread:$0]  %s249, 128, %s252, %s240
        $region36: #{tpu_custom_call.1} parent=27 // pred_fallthru
          _
      $region28: #{tpu_custom_call.1} parent=5 // pred_fallthru
        _
      %p255 = scmp.le.s32.totalorder 1, %s20
      %p256 = scmp.lt.s32.totalorder %s20, 3
      %p257 = pnand %p255, %p256
      %p258 = pneg %p257
      // Predicated region
      $region37: #{tpu_custom_call.1} parent=5 // pred_check
        _
      $region38: #{tpu_custom_call.1} parent=5 // pred_check_branch
        %260 = sbr.rel (%p257) target = $region40
      $region39: #{tpu_custom_call.1} parent=5 // pred_region
        %s261 = ssub.s32 %s20, 1
        %s262 = sand.u32 %s47, 1
        %s263 = scalar_lea.sflag [#allocation5], %s262
        %s264 = sand.u32 %s47, 1
        %s265 = smul.addr %s264, 8
        %s266 = scalar_lea.vmem [#allocation4], %s265
        // Predicated region
        $region41: #{tpu_custom_call.1} parent=39 // pred_check
          %p267 = pneg %p60
        $region42: #{tpu_custom_call.1} parent=39 // pred_check_branch
          %269 = sbr.rel (%p267) target = $region44
        $region43: #{tpu_custom_call.1} parent=39 // pred_region
          %270 = dma.done %s263, 128
        $region44: #{tpu_custom_call.1} parent=39 // pred_fallthru
          _
        %s271 = sand.u32 %s25, 1
        %s272 = scalar_lea.sflag [#allocation8], %s271
        %s273 = sand.u32 %s75, 1
        %s274 = smul.addr %s273, 8
        %s275 = scalar_lea.vmem [#allocation7], %s274
        // Predicated region
        $region45: #{tpu_custom_call.1} parent=39 // pred_check
          %p276 = pneg %p88
        $region46: #{tpu_custom_call.1} parent=39 // pred_check_branch
          %278 = sbr.rel (%p276) target = $region48
        $region47: #{tpu_custom_call.1} parent=39 // pred_region
          %279 = dma.done %s272, 128
        $region48: #{tpu_custom_call.1} parent=39 // pred_fallthru
          _
        // Predicated region
        $region49: #{tpu_custom_call.1} parent=39 // pred_check
          %p280 = pneg %p130
        $region50: #{tpu_custom_call.1} parent=39 // pred_check_branch
          %282 = sbr.rel (%p280) target = $region52
        $region51: #{tpu_custom_call.1} parent=39 // pred_region
          %283 = dma.done [#allocation8], 384
        $region52: #{tpu_custom_call.1} parent=39 // pred_fallthru
          _
        %s284 = sand.u32 %s47, 1
        %s285 = scalar_lea.sflag [#allocation5], %s284
        %s286 = sand.u32 %s47, 1
        %s287 = smul.addr %s286, 8
        %s288 = scalar_lea.vmem [#allocation4], %s287
        %p289 = pneg %p60
        %p290 = pneg %p57
        %s291 = sand.u32 %s25, 1
        %s292 = scalar_lea.sflag [#allocation8], %s291
        %s293 = sand.u32 %s75, 1
        %s294 = smul.addr %s293, 8
        %s295 = scalar_lea.vmem [#allocation7], %s294
        %p296 = pneg %p88
        %p297 = pneg %p85
        %p298 = pneg %p109
        %p299 = pneg %p106
        %p300 = pneg %p130
        %p301 = pneg %p127
        %p302 = pneg %p151
        %p303 = pneg %p148
        %p304 = pneg %p179
        %p305 = pneg %p176
        %s306 = sand.u32 %s166, 1
        %s307 = scalar_lea.sflag [#allocation6], %s306
        %s308 = sand.u32 %s166, 1
        %s309 = smul.addr %s308, 8
        %s310 = scalar_lea.vmem [#allocation10], %s309
        %p311 = scmp.eq.s32.totalorder %s30, 0
        // Predicated region
        $region53: #{tpu_custom_call.1} parent=39 // pred_check
          %p312 = pneg %p311
        $region54: #{tpu_custom_call.1} parent=39 // pred_check_branch
          %314 = sbr.rel (%p312) target = $region56
        $region55: #{tpu_custom_call.1} parent=39 // pred_region
          %vm315 = vcmask 56320
          %316 = vst.msk [vmem:[#allocation2] sm:$0xff] %vm315, 0.0
          %317 = vst.msk [vmem:[#allocation3] sm:$0xff] %vm315, 0.0
        $region56: #{tpu_custom_call.1} parent=39 // pred_fallthru
          _
        %v318 = vld [vmem:[%s266] sm:$0xff]
        %v319 = vld [vmem:[%s275] sm:$0xff]
        %v320 = vld [vmem:[#allocation2] sm:$0xff]
        %322 = vrot.lane.b32.xlu0 %v318, 7
        %v323 = vpop.permute.xlu0 %322
        %vm325 = vcmask 56320
        %v326 = vsel %vm325, %v320, %v323
        %v327 = vld [vmem:[#allocation3] sm:$0xff]
        %329 = vrot.lane.b32.xlu0 %v319, 7
        %v330 = vpop.permute.xlu0 %329
        %v332 = vsel %vm325, %v327, %v330
        %333 = vst.msk [vmem:[#allocation2] sm:$0xff] %vm325, %v323
        %334 = vst.msk [vmem:[#allocation3] sm:$0xff] %vm325, %v330
        %336 = vrot.lane.b32.xlu0 %v332, 127
        %v337 = vpop.permute.xlu0 %336
        %338 = vrot.lane.b32.xlu0 %v330, 127
        %v339 = vpop.permute.xlu0 %338
        %vm340 = vcmask 1039360
        %v341 = vsel %vm340, %v337, %v339
        %v344 = vld [vmem:[%s2] sm:$0xff]
        %vm345 = vcmask 130048
        %v347 = vsel %vm345, %v344, 0
        %349 = vmatprep.subr.mxu0 %v330
        %350 = vmatpush1.msra.mxu0 %v332
        %351 = vmatprep.subr.mxu0 %v339
        %352 = vmatpush1.msra.mxu0 %v341
        %353 = vmatprep.subr.mxu0 0.0
        %354 = vmatpush1.msra.mxu0 0.0
        %355 = vmatprep.subr.mxu0 0.0
        %356 = vmatpush1.msra.mxu0 0.0
        %357 = vmatprep.subr.mxu0 0.0
        %358 = vmatpush1.msra.mxu0 0.0
        %359 = vmatprep.subr.mxu0 0.0
        %360 = vmatpush1.msra.mxu0 0.0
        %361 = vmatprep.subr.mxu0 0.0
        %362 = vmatpush1.msra.mxu0 0.0
        %363 = vmatprep.subr.mxu0 0.0
        %364 = vmatpush1.msra.mxu0 0.0
        %365 = vmatprep.subr.mxu0 0.0
        %366 = vmatpush1.msra.mxu0 0.0
        %367 = vmatprep.subr.mxu0 0.0
        %368 = vmatpush1.msra.mxu0 0.0
        %369 = vmatprep.subr.mxu0 0.0
        %370 = vmatpush1.msra.mxu0 0.0
        %371 = vmatprep.subr.mxu0 0.0
        %372 = vmatpush1.msra.mxu0 0.0
        %373 = vmatprep.subr.mxu0 0.0
        %374 = vmatpush1.msra.mxu0 0.0
        %375 = vmatprep.subr.mxu0 0.0
        %376 = vmatpush1.msra.mxu0 0.0
        %377 = vmatprep.subr.mxu0 0.0
        %378 = vmatpush1.msra.mxu0 0.0
        %379 = vmatprep.subr.mxu0 0.0
        %380 = vmatpush1.msra.mxu0 0.0
        %381 = vmatprep.subr.mxu0 0.0
        %382 = vmatpush1.msra.mxu0 0.0
        %383 = vmatprep.subr.mxu0 0.0
        %384 = vmatpush1.msra.mxu0 0.0
        %385 = vmatprep.subr.mxu0 0.0
        %386 = vmatpush1.msra.mxu0 0.0
        %387 = vmatprep.subr.mxu0 0.0
        %388 = vmatpush1.msra.mxu0 0.0
        %389 = vmatprep.subr.mxu0 0.0
        %390 = vmatpush1.msra.mxu0 0.0
        %391 = vmatprep.subr.mxu0 0.0
        %392 = vmatpush1.msra.mxu0 0.0
        %393 = vmatprep.subr.mxu0 0.0
        %394 = vmatpush1.msra.mxu0 0.0
        %395 = vmatprep.subr.mxu0 0.0
        %396 = vmatpush1.msra.mxu0 0.0
        %397 = vmatprep.subr.mxu0 0.0
        %398 = vmatpush1.msra.mxu0 0.0
        %399 = vmatprep.subr.mxu0 0.0
        %400 = vmatpush1.msra.mxu0 0.0
        %401 = vmatprep.subr.mxu0 0.0
        %402 = vmatpush1.msra.mxu0 0.0
        %403 = vmatprep.subr.mxu0 0.0
        %404 = vmatpush1.msra.mxu0 0.0
        %405 = vmatprep.subr.mxu0 0.0
        %406 = vmatpush1.msra.mxu0 0.0
        %407 = vmatprep.subr.mxu0 0.0
        %408 = vmatpush1.msra.mxu0 0.0
        %409 = vmatprep.subr.mxu0 0.0
        %410 = vmatpush1.msra.mxu0 0.0
        %411 = vmatprep.subr.mxu0 0.0
        %412 = vmatpush1.msra.mxu0 0.0
        %413 = vmatprep.mubr.f32.mxu0 0.0
        %414 = vmatmul.mubr.f32.gmra.mrb[0].mxu0 %v347
        %v415 = vpop.f32.mrb[0].mxu0
        %v416 = vadd.f32 0.0, %v415
        %v417 = vpop.f32.mrb[0].mxu0
        %v418 = vadd.f32 0.0, %v417
        %419 = vdwg.mxu0
        %v420 = vld [vmem:[#allocation9] sm:$0xff]
        %v421 = vld [vmem:[%s4] sm:$0xff]
        %423 = vset.pattern.permute.xlu0 0
        %424 = vperm.xlu0 %423, %v421
        %v425 = vpop.permute.xlu0 %424
        %428 = vrot.lane.b32.xlu0 %v326, 127
        %v429 = vpop.permute.xlu0 %428
        %430 = vrot.lane.b32.xlu0 %v323, 127
        %v431 = vpop.permute.xlu0 %430
        %v432 = vsel %vm340, %v429, %v431
        %vm435 = vcmask 64512
        %v437 = vsel %vm435, %v420, 0
        %439 = vmatprep.subr.mxu0 %v431
        %440 = vmatpush1.msra.mxu0 %v432
        %441 = vmatprep.subr.mxu0 0.0
        %442 = vmatpush1.msra.mxu0 0.0
        %443 = vmatprep.subr.mxu0 0.0
        %444 = vmatpush1.msra.mxu0 0.0
        %445 = vmatprep.subr.mxu0 0.0
        %446 = vmatpush1.msra.mxu0 0.0
        %447 = vmatprep.subr.mxu0 0.0
        %448 = vmatpush1.msra.mxu0 0.0
        %449 = vmatprep.subr.mxu0 0.0
        %450 = vmatpush1.msra.mxu0 0.0
        %451 = vmatprep.subr.mxu0 0.0
        %452 = vmatpush1.msra.mxu0 0.0
        %453 = vmatprep.subr.mxu0 0.0
        %454 = vmatpush1.msra.mxu0 0.0
        %455 = vmatprep.subr.mxu0 0.0
        %456 = vmatpush1.msra.mxu0 0.0
        %457 = vmatprep.subr.mxu0 0.0
        %458 = vmatpush1.msra.mxu0 0.0
        %459 = vmatprep.subr.mxu0 0.0
        %460 = vmatpush1.msra.mxu0 0.0
        %461 = vmatprep.subr.mxu0 0.0
        %462 = vmatpush1.msra.mxu0 0.0
        %463 = vmatprep.subr.mxu0 0.0
        %464 = vmatpush1.msra.mxu0 0.0
        %465 = vmatprep.subr.mxu0 0.0
        %466 = vmatpush1.msra.mxu0 0.0
        %467 = vmatprep.subr.mxu0 0.0
        %468 = vmatpush1.msra.mxu0 0.0
        %469 = vmatprep.subr.mxu0 0.0
        %470 = vmatpush1.msra.mxu0 0.0
        %471 = vmatprep.subr.mxu0 0.0
        %472 = vmatpush1.msra.mxu0 0.0
        %473 = vmatprep.subr.mxu0 0.0
        %474 = vmatpush1.msra.mxu0 0.0
        %475 = vmatprep.subr.mxu0 0.0
        %476 = vmatpush1.msra.mxu0 0.0
        %477 = vmatprep.subr.mxu0 0.0
        %478 = vmatpush1.msra.mxu0 0.0
        %479 = vmatprep.subr.mxu0 0.0
        %480 = vmatpush1.msra.mxu0 0.0
        %481 = vmatprep.subr.mxu0 0.0
        %482 = vmatpush1.msra.mxu0 0.0
        %483 = vmatprep.subr.mxu0 0.0
        %484 = vmatpush1.msra.mxu0 0.0
        %485 = vmatprep.subr.mxu0 0.0
        %486 = vmatpush1.msra.mxu0 0.0
        %487 = vmatprep.subr.mxu0 0.0
        %488 = vmatpush1.msra.mxu0 0.0
        %489 = vmatprep.subr.mxu0 0.0
        %490 = vmatpush1.msra.mxu0 0.0
        %491 = vmatprep.subr.mxu0 0.0
        %492 = vmatpush1.msra.mxu0 0.0
        %493 = vmatprep.subr.mxu0 0.0
        %494 = vmatpush1.msra.mxu0 0.0
        %495 = vmatprep.subr.mxu0 0.0
        %496 = vmatpush1.msra.mxu0 0.0
        %497 = vmatprep.subr.mxu0 0.0
        %498 = vmatpush1.msra.mxu0 0.0
        %499 = vmatprep.subr.mxu0 0.0
        %500 = vmatpush1.msra.mxu0 0.0
        %501 = vmatprep.subr.mxu0 0.0
        %502 = vmatpush1.msra.mxu0 0.0
        %503 = vmatprep.mubr.f32.mxu0 0.0
        %504 = vmatmul.mubr.f32.gmra.mrb[0].mxu0 %v437
        %v505 = vpop.f32.mrb[0].mxu0
        %v506 = vadd.f32 %v425, %v505
        %v507 = vpop.f32.mrb[0].mxu0
        %v508 = vadd.f32 %v425, %v507
        %509 = vdwg.mxu0
        %v510 = vadd.f32 %v506, %v416
        %v511 = vadd.f32 %v508, %v418
        %v512 = vmax.f32 %v510, 0.0
        %v513 = vmax.f32 %v511, 0.0
        %516 = vrot.lane.b32.xlu0 %v512, 126
        %v517 = vpop.permute.xlu0 %516
        %518 = vrot.lane.b32.xlu0 %v513, 126
        %v519 = vpop.permute.xlu0 %518
        %vm520 = vcmask 1031168
        %v521 = vsel %vm520, %v517, %v519
        %s524 = scalar_lea.vmem %s2, 8
        %v525 = vld [vmem:[%s524] sm:$0xff]
        %v527 = vsel %vm345, %v525, 0
        %529 = vmatprep.subr.mxu0 %v513
        %530 = vmatpush1.msra.mxu0 %v512
        %531 = vmatprep.subr.mxu0 %v519
        %532 = vmatpush1.msra.mxu0 %v521
        %533 = vmatprep.subr.mxu0 0.0
        %534 = vmatpush1.msra.mxu0 0.0
        %535 = vmatprep.subr.mxu0 0.0
        %536 = vmatpush1.msra.mxu0 0.0
        %537 = vmatprep.subr.mxu0 0.0
        %538 = vmatpush1.msra.mxu0 0.0
        %539 = vmatprep.subr.mxu0 0.0
        %540 = vmatpush1.msra.mxu0 0.0
        %541 = vmatprep.subr.mxu0 0.0
        %542 = vmatpush1.msra.mxu0 0.0
        %543 = vmatprep.subr.mxu0 0.0
        %544 = vmatpush1.msra.mxu0 0.0
        %545 = vmatprep.subr.mxu0 0.0
        %546 = vmatpush1.msra.mxu0 0.0
        %547 = vmatprep.subr.mxu0 0.0
        %548 = vmatpush1.msra.mxu0 0.0
        %549 = vmatprep.subr.mxu0 0.0
        %550 = vmatpush1.msra.mxu0 0.0
        %551 = vmatprep.subr.mxu0 0.0
        %552 = vmatpush1.msra.mxu0 0.0
        %553 = vmatprep.subr.mxu0 0.0
        %554 = vmatpush1.msra.mxu0 0.0
        %555 = vmatprep.subr.mxu0 0.0
        %556 = vmatpush1.msra.mxu0 0.0
        %557 = vmatprep.subr.mxu0 0.0
        %558 = vmatpush1.msra.mxu0 0.0
        %559 = vmatprep.subr.mxu0 0.0
        %560 = vmatpush1.msra.mxu0 0.0
        %561 = vmatprep.subr.mxu0 0.0
        %562 = vmatpush1.msra.mxu0 0.0
        %563 = vmatprep.subr.mxu0 0.0
        %564 = vmatpush1.msra.mxu0 0.0
        %565 = vmatprep.subr.mxu0 0.0
        %566 = vmatpush1.msra.mxu0 0.0
        %567 = vmatprep.subr.mxu0 0.0
        %568 = vmatpush1.msra.mxu0 0.0
        %569 = vmatprep.subr.mxu0 0.0
        %570 = vmatpush1.msra.mxu0 0.0
        %571 = vmatprep.subr.mxu0 0.0
        %572 = vmatpush1.msra.mxu0 0.0
        %573 = vmatprep.subr.mxu0 0.0
        %574 = vmatpush1.msra.mxu0 0.0
        %575 = vmatprep.subr.mxu0 0.0
        %576 = vmatpush1.msra.mxu0 0.0
        %577 = vmatprep.subr.mxu0 0.0
        %578 = vmatpush1.msra.mxu0 0.0
        %579 = vmatprep.subr.mxu0 0.0
        %580 = vmatpush1.msra.mxu0 0.0
        %581 = vmatprep.subr.mxu0 0.0
        %582 = vmatpush1.msra.mxu0 0.0
        %583 = vmatprep.subr.mxu0 0.0
        %584 = vmatpush1.msra.mxu0 0.0
        %585 = vmatprep.subr.mxu0 0.0
        %586 = vmatpush1.msra.mxu0 0.0
        %587 = vmatprep.subr.mxu0 0.0
        %588 = vmatpush1.msra.mxu0 0.0
        %589 = vmatprep.subr.mxu0 0.0
        %590 = vmatpush1.msra.mxu0 0.0
        %591 = vmatprep.subr.mxu0 0.0
        %592 = vmatpush1.msra.mxu0 0.0
        %593 = vmatprep.mubr.f32.mxu0 0.0
        %594 = vmatmul.mubr.f32.gmra.mrb[0].mxu0 %v527
        %v595 = vpop.f32.mrb[0].mxu0
        %v596 = vadd.f32 0.0, %v595
        %v597 = vpop.f32.mrb[0].mxu0
        %v598 = vadd.f32 0.0, %v597
        %599 = vdwg.mxu0
        %s600 = scalar_lea.vmem [#allocation9], 8
        %v601 = vld [vmem:[%s600] sm:$0xff]
        %s602 = scalar_lea.vmem %s4, 8
        %v603 = vld [vmem:[%s602] sm:$0xff]
        %605 = vset.pattern.permute.xlu0 0
        %606 = vperm.xlu0 %605, %v603
        %v607 = vpop.permute.xlu0 %606
        %611 = vrot.lane.b32.xlu0 %v506, 126
        %v612 = vpop.permute.xlu0 %611
        %613 = vrot.lane.b32.xlu0 %v508, 126
        %v614 = vpop.permute.xlu0 %613
        %v615 = vsel %vm520, %v612, %v614
        %v619 = vsel %vm435, %v601, 0
        %621 = vmatprep.subr.mxu0 %v614
        %622 = vmatpush1.msra.mxu0 %v615
        %623 = vmatprep.subr.mxu0 0.0
        %624 = vmatpush1.msra.mxu0 0.0
        %625 = vmatprep.subr.mxu0 0.0
        %626 = vmatpush1.msra.mxu0 0.0
        %627 = vmatprep.subr.mxu0 0.0
        %628 = vmatpush1.msra.mxu0 0.0
        %629 = vmatprep.subr.mxu0 0.0
        %630 = vmatpush1.msra.mxu0 0.0
        %631 = vmatprep.subr.mxu0 0.0
        %632 = vmatpush1.msra.mxu0 0.0
        %633 = vmatprep.subr.mxu0 0.0
        %634 = vmatpush1.msra.mxu0 0.0
        %635 = vmatprep.subr.mxu0 0.0
        %636 = vmatpush1.msra.mxu0 0.0
        %637 = vmatprep.subr.mxu0 0.0
        %638 = vmatpush1.msra.mxu0 0.0
        %639 = vmatprep.subr.mxu0 0.0
        %640 = vmatpush1.msra.mxu0 0.0
        %641 = vmatprep.subr.mxu0 0.0
        %642 = vmatpush1.msra.mxu0 0.0
        %643 = vmatprep.subr.mxu0 0.0
        %644 = vmatpush1.msra.mxu0 0.0
        %645 = vmatprep.subr.mxu0 0.0
        %646 = vmatpush1.msra.mxu0 0.0
        %647 = vmatprep.subr.mxu0 0.0
        %648 = vmatpush1.msra.mxu0 0.0
        %649 = vmatprep.subr.mxu0 0.0
        %650 = vmatpush1.msra.mxu0 0.0
        %651 = vmatprep.subr.mxu0 0.0
        %652 = vmatpush1.msra.mxu0 0.0
        %653 = vmatprep.subr.mxu0 0.0
        %654 = vmatpush1.msra.mxu0 0.0
        %655 = vmatprep.subr.mxu0 0.0
        %656 = vmatpush1.msra.mxu0 0.0
        %657 = vmatprep.subr.mxu0 0.0
        %658 = vmatpush1.msra.mxu0 0.0
        %659 = vmatprep.subr.mxu0 0.0
        %660 = vmatpush1.msra.mxu0 0.0
        %661 = vmatprep.subr.mxu0 0.0
        %662 = vmatpush1.msra.mxu0 0.0
        %663 = vmatprep.subr.mxu0 0.0
        %664 = vmatpush1.msra.mxu0 0.0
        %665 = vmatprep.subr.mxu0 0.0
        %666 = vmatpush1.msra.mxu0 0.0
        %667 = vmatprep.subr.mxu0 0.0
        %668 = vmatpush1.msra.mxu0 0.0
        %669 = vmatprep.subr.mxu0 0.0
        %670 = vmatpush1.msra.mxu0 0.0
        %671 = vmatprep.subr.mxu0 0.0
        %672 = vmatpush1.msra.mxu0 0.0
        %673 = vmatprep.subr.mxu0 0.0
        %674 = vmatpush1.msra.mxu0 0.0
        %675 = vmatprep.subr.mxu0 0.0
        %676 = vmatpush1.msra.mxu0 0.0
        %677 = vmatprep.subr.mxu0 0.0
        %678 = vmatpush1.msra.mxu0 0.0
        %679 = vmatprep.subr.mxu0 0.0
        %680 = vmatpush1.msra.mxu0 0.0
        %681 = vmatprep.subr.mxu0 0.0
        %682 = vmatpush1.msra.mxu0 0.0
        %683 = vmatprep.subr.mxu0 0.0
        %684 = vmatpush1.msra.mxu0 0.0
        %685 = vmatprep.mubr.f32.mxu0 0.0
        %686 = vmatmul.mubr.f32.gmra.mrb[0].mxu0 %v619
        %v687 = vpop.f32.mrb[0].mxu0
        %v688 = vadd.f32 %v607, %v687
        %v689 = vpop.f32.mrb[0].mxu0
        %v690 = vadd.f32 %v607, %v689
        %691 = vdwg.mxu0
        %v692 = vadd.f32 %v688, %v596
        %v693 = vadd.f32 %v690, %v598
        %v694 = vmax.f32 %v692, 0.0
        %v695 = vmax.f32 %v693, 0.0
        %698 = vrot.lane.b32.xlu0 %v694, 124
        %v699 = vpop.permute.xlu0 %698
        %700 = vrot.lane.b32.xlu0 %v695, 124
        %v701 = vpop.permute.xlu0 %700
        %vm702 = vcmask 1014784
        %v703 = vsel %vm702, %v699, %v701
        %s705 = scalar_lea.vmem %s2, 16
        %v706 = vld [vmem:[%s705] sm:$0xff]
        %v708 = vsel %vm345, %v706, 0
        %710 = vmatprep.subr.mxu0 0.0
        %711 = vmatpush1.msra.mxu0 %v694
        %712 = vmatprep.subr.mxu0 0.0
        %713 = vmatpush1.msra.mxu0 %v703
        %714 = vmatprep.subr.mxu0 0.0
        %715 = vmatpush1.msra.mxu0 0.0
        %716 = vmatprep.subr.mxu0 0.0
        %717 = vmatpush1.msra.mxu0 0.0
        %718 = vmatprep.subr.mxu0 0.0
        %719 = vmatpush1.msra.mxu0 0.0
        %720 = vmatprep.subr.mxu0 0.0
        %721 = vmatpush1.msra.mxu0 0.0
        %722 = vmatprep.subr.mxu0 0.0
        %723 = vmatpush1.msra.mxu0 0.0
        %724 = vmatprep.subr.mxu0 0.0
        %725 = vmatpush1.msra.mxu0 0.0
        %726 = vmatprep.subr.mxu0 0.0
        %727 = vmatpush1.msra.mxu0 0.0
        %728 = vmatprep.subr.mxu0 0.0
        %729 = vmatpush1.msra.mxu0 0.0
        %730 = vmatprep.subr.mxu0 0.0
        %731 = vmatpush1.msra.mxu0 0.0
        %732 = vmatprep.subr.mxu0 0.0
        %733 = vmatpush1.msra.mxu0 0.0
        %734 = vmatprep.subr.mxu0 0.0
        %735 = vmatpush1.msra.mxu0 0.0
        %736 = vmatprep.subr.mxu0 0.0
        %737 = vmatpush1.msra.mxu0 0.0
        %738 = vmatprep.subr.mxu0 0.0
        %739 = vmatpush1.msra.mxu0 0.0
        %740 = vmatprep.subr.mxu0 0.0
        %741 = vmatpush1.msra.mxu0 0.0
        %742 = vmatprep.subr.mxu0 0.0
        %743 = vmatpush1.msra.mxu0 0.0
        %744 = vmatprep.subr.mxu0 0.0
        %745 = vmatpush1.msra.mxu0 0.0
        %746 = vmatprep.subr.mxu0 0.0
        %747 = vmatpush1.msra.mxu0 0.0
        %748 = vmatprep.subr.mxu0 0.0
        %749 = vmatpush1.msra.mxu0 0.0
        %750 = vmatprep.subr.mxu0 0.0
        %751 = vmatpush1.msra.mxu0 0.0
        %752 = vmatprep.subr.mxu0 0.0
        %753 = vmatpush1.msra.mxu0 0.0
        %754 = vmatprep.subr.mxu0 0.0
        %755 = vmatpush1.msra.mxu0 0.0
        %756 = vmatprep.subr.mxu0 0.0
        %757 = vmatpush1.msra.mxu0 0.0
        %758 = vmatprep.subr.mxu0 0.0
        %759 = vmatpush1.msra.mxu0 0.0
        %760 = vmatprep.subr.mxu0 0.0
        %761 = vmatpush1.msra.mxu0 0.0
        %762 = vmatprep.subr.mxu0 0.0
        %763 = vmatpush1.msra.mxu0 0.0
        %764 = vmatprep.subr.mxu0 0.0
        %765 = vmatpush1.msra.mxu0 0.0
        %766 = vmatprep.subr.mxu0 0.0
        %767 = vmatpush1.msra.mxu0 0.0
        %768 = vmatprep.subr.mxu0 0.0
        %769 = vmatpush1.msra.mxu0 0.0
        %770 = vmatprep.subr.mxu0 0.0
        %771 = vmatpush1.msra.mxu0 0.0
        %772 = vmatprep.subr.mxu0 0.0
        %773 = vmatpush1.msra.mxu0 0.0
        %774 = vmatprep.mubr.f32.mxu0 0.0
        %775 = vmatmul.mubr.f32.gmra.mrb[0].mxu0 %v708
        %v776 = vpop.f32.mrb[0].mxu0
        %v777 = vadd.f32 0.0, %v776
        %v778 = vpop.f32.mrb[0].mxu0
        %779 = vdwg.mxu0
        %s780 = scalar_lea.vmem [#allocation9], 16
        %v781 = vld [vmem:[%s780] sm:$0xff]
        %s782 = scalar_lea.vmem %s4, 16
        %v783 = vld [vmem:[%s782] sm:$0xff]
        %785 = vset.pattern.permute.xlu0 0
        %786 = vperm.xlu0 %785, %v783
        %v787 = vpop.permute.xlu0 %786
        %791 = vrot.lane.b32.xlu0 %v688, 124
        %v792 = vpop.permute.xlu0 %791
        %793 = vrot.lane.b32.xlu0 %v690, 124
        %v794 = vpop.permute.xlu0 %793
        %v795 = vsel %vm702, %v792, %v794
        %v798 = vsel %vm435, %v781, 0
        %800 = vmatprep.subr.mxu0 0.0
        %801 = vmatpush1.msra.mxu0 %v795
        %802 = vmatprep.subr.mxu0 0.0
        %803 = vmatpush1.msra.mxu0 0.0
        %804 = vmatprep.subr.mxu0 0.0
        %805 = vmatpush1.msra.mxu0 0.0
        %806 = vmatprep.subr.mxu0 0.0
        %807 = vmatpush1.msra.mxu0 0.0
        %808 = vmatprep.subr.mxu0 0.0
        %809 = vmatpush1.msra.mxu0 0.0
        %810 = vmatprep.subr.mxu0 0.0
        %811 = vmatpush1.msra.mxu0 0.0
        %812 = vmatprep.subr.mxu0 0.0
        %813 = vmatpush1.msra.mxu0 0.0
        %814 = vmatprep.subr.mxu0 0.0
        %815 = vmatpush1.msra.mxu0 0.0
        %816 = vmatprep.subr.mxu0 0.0
        %817 = vmatpush1.msra.mxu0 0.0
        %818 = vmatprep.subr.mxu0 0.0
        %819 = vmatpush1.msra.mxu0 0.0
        %820 = vmatprep.subr.mxu0 0.0
        %821 = vmatpush1.msra.mxu0 0.0
        %822 = vmatprep.subr.mxu0 0.0
        %823 = vmatpush1.msra.mxu0 0.0
        %824 = vmatprep.subr.mxu0 0.0
        %825 = vmatpush1.msra.mxu0 0.0
        %826 = vmatprep.subr.mxu0 0.0
        %827 = vmatpush1.msra.mxu0 0.0
        %828 = vmatprep.subr.mxu0 0.0
        %829 = vmatpush1.msra.mxu0 0.0
        %830 = vmatprep.subr.mxu0 0.0
        %831 = vmatpush1.msra.mxu0 0.0
        %832 = vmatprep.subr.mxu0 0.0
        %833 = vmatpush1.msra.mxu0 0.0
        %834 = vmatprep.subr.mxu0 0.0
        %835 = vmatpush1.msra.mxu0 0.0
        %836 = vmatprep.subr.mxu0 0.0
        %837 = vmatpush1.msra.mxu0 0.0
        %838 = vmatprep.subr.mxu0 0.0
        %839 = vmatpush1.msra.mxu0 0.0
        %840 = vmatprep.subr.mxu0 0.0
        %841 = vmatpush1.msra.mxu0 0.0
        %842 = vmatprep.subr.mxu0 0.0
        %843 = vmatpush1.msra.mxu0 0.0
        %844 = vmatprep.subr.mxu0 0.0
        %845 = vmatpush1.msra.mxu0 0.0
        %846 = vmatprep.subr.mxu0 0.0
        %847 = vmatpush1.msra.mxu0 0.0
        %848 = vmatprep.subr.mxu0 0.0
        %849 = vmatpush1.msra.mxu0 0.0
        %850 = vmatprep.subr.mxu0 0.0
        %851 = vmatpush1.msra.mxu0 0.0
        %852 = vmatprep.subr.mxu0 0.0
        %853 = vmatpush1.msra.mxu0 0.0
        %854 = vmatprep.subr.mxu0 0.0
        %855 = vmatpush1.msra.mxu0 0.0
        %856 = vmatprep.subr.mxu0 0.0
        %857 = vmatpush1.msra.mxu0 0.0
        %858 = vmatprep.subr.mxu0 0.0
        %859 = vmatpush1.msra.mxu0 0.0
        %860 = vmatprep.subr.mxu0 0.0
        %861 = vmatpush1.msra.mxu0 0.0
        %862 = vmatprep.subr.mxu0 0.0
        %863 = vmatpush1.msra.mxu0 0.0
        %864 = vmatprep.mubr.f32.mxu0 0.0
        %865 = vmatmul.mubr.f32.gmra.mrb[0].mxu0 %v798
        %v866 = vpop.f32.mrb[0].mxu0
        %v867 = vadd.f32 %v787, %v866
        %v868 = vpop.f32.mrb[0].mxu0
        %869 = vdwg.mxu0
        %v870 = vadd.f32 %v867, %v777
        %v871 = vmax.f32 %v870, 0.0
        %872 = vst [vmem:[%s310] sm:$0xff] %v871
        %s873 = sand.u32 %s166, 1
        %s874 = scalar_lea.sflag [#allocation6], %s873
        %s875 = sand.u32 %s166, 1
        %s876 = smul.addr %s875, 8
        %s877 = scalar_lea.vmem [#allocation10], %s876
        // Predicated region
        $region57: #{tpu_custom_call.1} parent=39 // pred_check
          %p878 = pneg %p176
        $region58: #{tpu_custom_call.1} parent=39 // pred_check_branch
          %880 = sbr.rel (%p878) target = $region60
        $region59: #{tpu_custom_call.1} parent=39 // pred_region
          %s882 = ssub.s32 128, 128
          %883 = vsyncadd %s874, %s882
          %s884 = sadd.s32 %s30, %s29
          %s885 = smul.addr %s884, 128
          %s886 = scalar_lea.hbm %s5, %s885
          %s888 = sshll.u32 %s877, 4
          %s889 = int_to_ptr.vmem [resolvable:$true] %s888
          %891 = dma.vmem_to_hbm [thread:$0]  %s889, 128, %s886, %s874
        $region60: #{tpu_custom_call.1} parent=39 // pred_fallthru
          _
      $region40: #{tpu_custom_call.1} parent=5 // pred_fallthru
        _
      %p892 = scmp.le.s32.totalorder 2, %s20
      // Predicated region
      $region61: #{tpu_custom_call.1} parent=5 // pred_check
        %p893 = pneg %p892
      $region62: #{tpu_custom_call.1} parent=5 // pred_check_branch
        %895 = sbr.rel (%p893) target = $region64
      $region63: #{tpu_custom_call.1} parent=5 // pred_region
        %s896 = ssub.s32 %s20, 2
        // Predicated region
        $region65: #{tpu_custom_call.1} parent=63 // pred_check
          %p897 = pneg %p182
        $region66: #{tpu_custom_call.1} parent=63 // pred_check_branch
          %899 = sbr.rel (%p897) target = $region68
        $region67: #{tpu_custom_call.1} parent=63 // pred_region
          %s900 = sand.u32 %s167, 1
          %s901 = scalar_lea.sflag [#allocation6], %s900
          %s902 = sand.u32 %s167, 1
          %s903 = smul.addr %s902, 8
          %s904 = scalar_lea.vmem [#allocation10], %s903
          %905 = dma.done %s901, 128
        $region68: #{tpu_custom_call.1} parent=63 // pred_fallthru
          _
      $region64: #{tpu_custom_call.1} parent=5 // pred_fallthru
        _
    $region6: #{tpu_custom_call.1} parent=1 // loop_footer
      %s24 = sadd.s32 1, %s20
    $region7: #{tpu_custom_call.1} parent=1 // loop_footer_branch
      %19 = sbr.rel target = $region3
    $region8: #{tpu_custom_call.1} parent=1 // loop_exit
      _
    %906 = vsyncpa [#allocation5], 1
    %s907 = scalar_lea.sflag [#allocation5], 1
    %908 = vsyncpa %s907, 1
    %909 = vsyncpa [#allocation8], 1
    %s910 = scalar_lea.sflag [#allocation8], 1
    %911 = vsyncpa %s910, 1
    %912 = vsyncpa [#allocation6], 1
    %s913 = scalar_lea.sflag [#allocation6], 1
    %914 = vsyncpa %s913, 1

</llo_original>
